<compile_context>
chip_gen: v7x
topology: tpu7x:2x2x1
jax: 0.10.0
libtpu: 0.0.40
codegen_flags: <defaults>
</compile_context>

<pallas_src>
import functools

import jax
import jax.numpy as jnp
from jax.experimental import pallas as pl
from jax.experimental.pallas import tpu as pltpu


def _rnn_kernel(x_ref, wih0_ref, b0_ref, wblk_ref, b1_ref, wfc_ref, bfc_ref,
                out_ref, hlast_ref, *, T, B, Bp):
    """Whole sequence in one invocation.

    x_ref    : (T*Bp, I)   flattened time-major input, batch padded to Bp rows
    wih0_ref : (I, H)      W_ih0^T
    b0_ref   : (1, H)      b_ih0 + b_hh0
    wblk_ref : (2H, 2H)    [[W_hh0^T, W_ih1^T], [0, W_hh1^T]]  (fused block weight)
    b1_ref   : (1, H)      b_ih1 + b_hh1
    wfc_ref  : (H, O)      W_fc^T        bfc_ref : (1, O)
    out_ref  : (T, O)      fc(h2_t[B-1]) for every t
    hlast_ref: (T, H)      VMEM scratch for the collected h2_t[B-1] rows
    """
    H = b0_ref.shape[1]

    # ---- Hoisted layer-0 input projection (no time dependence) --------------
    xp = (jnp.dot(x_ref[...], wih0_ref[...],
                  preferred_element_type=jnp.float32)
          + b0_ref[...])                                        # (T*Bp, H)

    # Precomputed per-step additive slab [xp_t | b1] for t = 0..T.  Time index
    # T is a dummy row-block (first half never consumed by a real output).
    xp_pad = jnp.concatenate(
        [xp, jnp.zeros((Bp, H), jnp.float32)], axis=0)          # ((T+1)*Bp, H)
    b1_full = jnp.broadcast_to(b1_ref[...], ((T + 1) * Bp, H))  # hoisted (no CSE in loops)
    xb = jnp.concatenate([xp_pad, b1_full], axis=1)             # ((T+1)*Bp, 2H)

    wblk = wblk_ref[...]                                        # (2H, 2H)

    # ---- Layer-skewed recurrence: one MXU push + one tanh per timestep ------
    # State S_s = [h1_s | h2_{s-1}].  S_0 = [tanh(xp_0) | 0]  (h1_{-1}=h2_{-1}=0).
    s_state = jnp.concatenate(
        [jnp.tanh(xp[0:Bp, :]), jnp.zeros((Bp, H), jnp.float32)], axis=1)

    # TODO(synk): for large T/H switch to lax.fori_loop (small unroll) and read
    #             weights from refs inside the dot to bound vreg live ranges.
    for s in range(T):  # static Python unroll (T is a compile-time int)
        s_state = jnp.tanh(
            jnp.dot(s_state, wblk, preferred_element_type=jnp.float32)
            + xb[(s + 1) * Bp:(s + 2) * Bp, :])                 # aligned 8-row slice
        # Second half of S_{s+1} is h2_s; keep only the last *real* batch row
        # (PyTorch's rnn_out[:, -1, :]).  Off the recurrence dependence chain.
        hlast_ref[pl.ds(s, 1), :] = s_state[B - 1:B, H:]

    # ---- Batched FC + single output store ------------------------------------
    out_ref[...] = (jnp.dot(hlast_ref[...], wfc_ref[...],
                            preferred_element_type=jnp.float32)
                    + bfc_ref[...])


def rnn_motion_classifier(x, params):
    """x: (T, B, I) float32 -> (T, O) float32."""
    T, B, I = x.shape
    H = params["w_hh0_t"].shape[0]
    O = params["w_fc_t"].shape[1]

    # Pad batch to a sublane multiple so per-step slices are tile-aligned.
    # Padded rows evolve independently and never feed the output.
    Bp = max(8, ((B + 7) // 8) * 8)
    x_pad = jnp.zeros((T, Bp, I), x.dtype).at[:, :B, :].set(x)
    x_flat = x_pad.reshape(T * Bp, I)

    kernel = functools.partial(_rnn_kernel, T=T, B=B, Bp=Bp)

    out = pl.pallas_call(
        kernel,
        out_shape=jax.ShapeDtypeStruct((T, O), jnp.float32),
        grid_spec=pltpu.PrefetchScalarGridSpec(
            num_scalar_prefetch=0,
            grid=(1,),  # single program: whole recurrence inside one invocation
            in_specs=[
                pl.BlockSpec((T * Bp, I), lambda i: (0, 0)),     # x (flattened, padded)
                pl.BlockSpec((I, H), lambda i: (0, 0)),          # W_ih0^T
                pl.BlockSpec((1, H), lambda i: (0, 0)),          # b_ih0 + b_hh0
                pl.BlockSpec((2 * H, 2 * H), lambda i: (0, 0)),  # fused block weight
                pl.BlockSpec((1, H), lambda i: (0, 0)),          # b_ih1 + b_hh1
                pl.BlockSpec((H, O), lambda i: (0, 0)),          # W_fc^T
                pl.BlockSpec((1, O), lambda i: (0, 0)),          # b_fc
            ],
            out_specs=pl.BlockSpec((T, O), lambda i: (0, 0)),
            scratch_shapes=[pltpu.VMEM((T, H), jnp.float32)],    # collected h2 rows
        ),
        compiler_params=pltpu.CompilerParams(
            dimension_semantics=("arbitrary",),  # recurrence is sequential
        ),
    )(
        x_flat,
        params["w_ih0_t"], params["b0"],
        params["w_blk"], params["b1"],
        params["w_fc_t"], params["b_fc"],
    )
    return out


def init_params(key, input_size, hidden_size, output_size):
    """Deterministic init mimicking PyTorch's U(-1/sqrt(H), 1/sqrt(H))."""
    ks = jax.random.split(key, 10)
    s = 1.0 / jnp.sqrt(jnp.float32(hidden_size))

    def u(k, shape):
        return jax.random.uniform(k, shape, jnp.float32, -s, s)

    H = hidden_size
    # Stored already transposed: (in_features, out_features).
    w_ih0_t = u(ks[0], (input_size, H))
    w_hh0_t = u(ks[1], (H, H))
    b_ih0 = u(ks[2], (1, H))
    b_hh0 = u(ks[3], (1, H))
    w_ih1_t = u(ks[4], (H, H))
    w_hh1_t = u(ks[5], (H, H))
    b_ih1 = u(ks[6], (1, H))
    b_hh1 = u(ks[7], (1, H))
    w_fc_t = u(ks[8], (H, output_size))
    b_fc = u(ks[9], (1, output_size))

    # Fused block weight for the layer-skewed recurrence:
    #   [h1_s | h2_{s-1}] @ [[W_hh0^T, W_ih1^T], [0, W_hh1^T]]
    w_blk = jnp.concatenate(
        [jnp.concatenate([w_hh0_t, w_ih1_t], axis=1),
         jnp.concatenate([jnp.zeros((H, H), jnp.float32), w_hh1_t], axis=1)],
        axis=0)

    return {
        "w_ih0_t": w_ih0_t, "w_hh0_t": w_hh0_t, "b0": b_ih0 + b_hh0,
        "w_ih1_t": w_ih1_t, "w_hh1_t": w_hh1_t, "b1": b_ih1 + b_hh1,
        "w_blk": w_blk,
        "w_fc_t": w_fc_t, "b_fc": b_fc,
    }


def reference_forward(x, p):
    """Pure-JAX reference matching PyTorch nn.RNN (tanh) + fc(rnn_out[:, -1, :])."""
    T, B, _ = x.shape
    H = p["w_hh0_t"].shape[0]

    def step(carry, x_t):
        h1, h2 = carry
        h1 = jnp.tanh(x_t @ p["w_ih0_t"] + h1 @ p["w_hh0_t"] + p["b0"])
        h2 = jnp.tanh(h1 @ p["w_ih1_t"] + h2 @ p["w_hh1_t"] + p["b1"])
        out_t = h2[-1] @ p["w_fc_t"] + p["b_fc"][0]
        return (h1, h2), out_t

    init = (jnp.zeros((B, H), jnp.float32), jnp.zeros((B, H), jnp.float32))
    _, outs = jax.lax.scan(step, init, x)
    return outs  # (T, O)


if __name__ == "__main__":
    # Small, TPU-friendly shapes consistent with the module's forward.
    T, B = 8, 2          # seq_len, batch (batch_first=False => x is (T, B, I))
    INPUT_SIZE = 16
    HIDDEN_SIZE = 32
    OUTPUT_SIZE = 8
    # NOTE: num_layers is fixed at 2 inside the kernel (matching the module default).

    key = jax.random.PRNGKey(0)
    kx, kp = jax.random.split(key)
    x = jax.random.normal(kx, (T, B, INPUT_SIZE), dtype=jnp.float32)
    params = init_params(kp, INPUT_SIZE, HIDDEN_SIZE, OUTPUT_SIZE)

    out = jax.block_until_ready(rnn_motion_classifier(x, params))
    ref = jax.block_until_ready(reference_forward(x, params))

    assert out.shape == (T, OUTPUT_SIZE), out.shape
    assert jnp.allclose(out, ref, atol=1e-4, rtol=1e-4), (
        float(jnp.max(jnp.abs(out - ref)))
    )
    print("KERNEL_OK")
</pallas_src>

<mosaic_0001>
module attributes {stable_mosaic.version = 11 : i64} {
  func.func @_rnn_kernel(%arg0: i32, %arg1: memref<64x16xf32, #tpu.memory_space<vmem>>, %arg2: memref<16x32xf32, #tpu.memory_space<vmem>>, %arg3: memref<1x32xf32, #tpu.memory_space<vmem>>, %arg4: memref<64x64xf32, #tpu.memory_space<vmem>>, %arg5: memref<1x32xf32, #tpu.memory_space<vmem>>, %arg6: memref<32x8xf32, #tpu.memory_space<vmem>>, %arg7: memref<1x8xf32, #tpu.memory_space<vmem>>, %arg8: memref<8x8xf32, #tpu.memory_space<vmem>>, %arg9: memref<8x32xf32, #tpu.memory_space<vmem>>) attributes {dimension_semantics = [#tpu.dimension_semantics<arbitrary>], iteration_bounds = array<i64: 1>, scalar_prefetch = 0 : i64, scratch_operands = 1 : i64, tpu.core_type = #tpu.core_type<tc>, window_params = [{pipeline_mode = #tpu.pipeline_mode<synchronous>, transform_indices = @transform_0, window_bounds = array<i64: 64, 16>}, {pipeline_mode = #tpu.pipeline_mode<synchronous>, transform_indices = @transform_1, window_bounds = array<i64: 16, 32>}, {pipeline_mode = #tpu.pipeline_mode<synchronous>, transform_indices = @transform_2, window_bounds = array<i64: 1, 32>}, {pipeline_mode = #tpu.pipeline_mode<synchronous>, transform_indices = @transform_3, window_bounds = array<i64: 64, 64>}, {pipeline_mode = #tpu.pipeline_mode<synchronous>, transform_indices = @transform_4, window_bounds = array<i64: 1, 32>}, {pipeline_mode = #tpu.pipeline_mode<synchronous>, transform_indices = @transform_5, window_bounds = array<i64: 32, 8>}, {pipeline_mode = #tpu.pipeline_mode<synchronous>, transform_indices = @transform_6, window_bounds = array<i64: 1, 8>}, {pipeline_mode = #tpu.pipeline_mode<synchronous>, transform_indices = @transform_7, window_bounds = array<i64: 8, 8>}]} {
    %c0 = arith.constant 0 : index
    %c0_0 = arith.constant 0 : index
    %0 = vector.load %arg1[%c0, %c0_0] : memref<64x16xf32, #tpu.memory_space<vmem>>, vector<64x16xf32>
    %c0_1 = arith.constant 0 : index
    %c0_2 = arith.constant 0 : index
    %1 = vector.load %arg2[%c0_1, %c0_2] : memref<16x32xf32, #tpu.memory_space<vmem>>, vector<16x32xf32>
    %cst = arith.constant dense<0.000000e+00> : vector<64x32xf32>
    %2 = tpu.matmul %0, %1, %cst {dimension_numbers = #tpu.dot_dimension_numbers<[1], [0], [0], [1], [0, 0, 1, 1], [], []>} : vector<64x16xf32>, vector<16x32xf32>, vector<64x32xf32> -> vector<64x32xf32>
    %c0_3 = arith.constant 0 : index
    %c0_4 = arith.constant 0 : index
    %3 = vector.load %arg3[%c0_3, %c0_4] : memref<1x32xf32, #tpu.memory_space<vmem>>, vector<1x32xf32>
    %4 = vector.broadcast %3 : vector<1x32xf32> to vector<64x32xf32>
    %5 = arith.addf %2, %4 : vector<64x32xf32>
    %cst_5 = arith.constant 0.000000e+00 : f32
    %6 = vector.broadcast %cst_5 : f32 to vector<8x32xf32>
    %7 = tpu.concatenate %5, %6 in 0 : vector<64x32xf32>, vector<8x32xf32> -> vector<72x32xf32>
    %c0_6 = arith.constant 0 : index
    %c0_7 = arith.constant 0 : index
    %8 = vector.load %arg5[%c0_6, %c0_7] : memref<1x32xf32, #tpu.memory_space<vmem>>, vector<1x32xf32>
    %9 = vector.shape_cast %8 : vector<1x32xf32> to vector<1x32xf32>
    %10 = vector.broadcast %9 : vector<1x32xf32> to vector<72x32xf32>
    %11 = tpu.concatenate %7, %10 in 1 : vector<72x32xf32>, vector<72x32xf32> -> vector<72x64xf32>
    %c0_8 = arith.constant 0 : index
    %c0_9 = arith.constant 0 : index
    %12 = vector.load %arg4[%c0_8, %c0_9] : memref<64x64xf32, #tpu.memory_space<vmem>>, vector<64x64xf32>
    %13 = vector.extract_strided_slice %5 {offsets = [0, 0], sizes = [8, 32], strides = [1, 1]} : vector<64x32xf32> to vector<8x32xf32>
    %14 = math.tanh %13 : vector<8x32xf32>
    %cst_10 = arith.constant 0.000000e+00 : f32
    %15 = vector.broadcast %cst_10 : f32 to vector<8x32xf32>
    %16 = tpu.concatenate %14, %15 in 1 : vector<8x32xf32>, vector<8x32xf32> -> vector<8x64xf32>
    %cst_11 = arith.constant dense<0.000000e+00> : vector<8x64xf32>
    %17 = tpu.matmul %16, %12, %cst_11 {dimension_numbers = #tpu.dot_dimension_numbers<[1], [0], [0], [1], [0, 0, 1, 1], [], []>} : vector<8x64xf32>, vector<64x64xf32>, vector<8x64xf32> -> vector<8x64xf32>
    %18 = vector.extract_strided_slice %11 {offsets = [8, 0], sizes = [8, 64], strides = [1, 1]} : vector<72x64xf32> to vector<8x64xf32>
    %19 = arith.addf %17, %18 : vector<8x64xf32>
    %20 = math.tanh %19 : vector<8x64xf32>
    %21 = vector.extract_strided_slice %20 {offsets = [1, 32], sizes = [1, 32], strides = [1, 1]} : vector<8x64xf32> to vector<1x32xf32>
    %c0_12 = arith.constant 0 : index
    %c0_13 = arith.constant 0 : index
    %22 = vector.load %arg9[%c0_12, %c0_13] : memref<8x32xf32, #tpu.memory_space<vmem>>, vector<1x32xf32>
    tpu.vector_store %arg9[%c0_12, %c0_13], %21 {strides = array<i32>} : memref<8x32xf32, #tpu.memory_space<vmem>>, vector<1x32xf32>,
    %cst_14 = arith.constant dense<0.000000e+00> : vector<8x64xf32>
    %23 = tpu.matmul %20, %12, %cst_14 {dimension_numbers = #tpu.dot_dimension_numbers<[1], [0], [0], [1], [0, 0, 1, 1], [], []>} : vector<8x64xf32>, vector<64x64xf32>, vector<8x64xf32> -> vector<8x64xf32>
    %24 = vector.extract_strided_slice %11 {offsets = [16, 0], sizes = [8, 64], strides = [1, 1]} : vector<72x64xf32> to vector<8x64xf32>
    %25 = arith.addf %23, %24 : vector<8x64xf32>
    %26 = math.tanh %25 : vector<8x64xf32>
    %27 = vector.extract_strided_slice %26 {offsets = [1, 32], sizes = [1, 32], strides = [1, 1]} : vector<8x64xf32> to vector<1x32xf32>
    %c1 = arith.constant 1 : index
    %c0_15 = arith.constant 0 : index
    %28 = vector.load %arg9[%c1, %c0_15] : memref<8x32xf32, #tpu.memory_space<vmem>>, vector<1x32xf32>
    tpu.vector_store %arg9[%c1, %c0_15], %27 {strides = array<i32>} : memref<8x32xf32, #tpu.memory_space<vmem>>, vector<1x32xf32>,
    %cst_16 = arith.constant dense<0.000000e+00> : vector<8x64xf32>
    %29 = tpu.matmul %26, %12, %cst_16 {dimension_numbers = #tpu.dot_dimension_numbers<[1], [0], [0], [1], [0, 0, 1, 1], [], []>} : vector<8x64xf32>, vector<64x64xf32>, vector<8x64xf32> -> vector<8x64xf32>
    %30 = vector.extract_strided_slice %11 {offsets = [24, 0], sizes = [8, 64], strides = [1, 1]} : vector<72x64xf32> to vector<8x64xf32>
    %31 = arith.addf %29, %30 : vector<8x64xf32>
    %32 = math.tanh %31 : vector<8x64xf32>
    %33 = vector.extract_strided_slice %32 {offsets = [1, 32], sizes = [1, 32], strides = [1, 1]} : vector<8x64xf32> to vector<1x32xf32>
    %c2 = arith.constant 2 : index
    %c0_17 = arith.constant 0 : index
    %34 = vector.load %arg9[%c2, %c0_17] : memref<8x32xf32, #tpu.memory_space<vmem>>, vector<1x32xf32>
    tpu.vector_store %arg9[%c2, %c0_17], %33 {strides = array<i32>} : memref<8x32xf32, #tpu.memory_space<vmem>>, vector<1x32xf32>,
    %cst_18 = arith.constant dense<0.000000e+00> : vector<8x64xf32>
    %35 = tpu.matmul %32, %12, %cst_18 {dimension_numbers = #tpu.dot_dimension_numbers<[1], [0], [0], [1], [0, 0, 1, 1], [], []>} : vector<8x64xf32>, vector<64x64xf32>, vector<8x64xf32> -> vector<8x64xf32>
    %36 = vector.extract_strided_slice %11 {offsets = [32, 0], sizes = [8, 64], strides = [1, 1]} : vector<72x64xf32> to vector<8x64xf32>
    %37 = arith.addf %35, %36 : vector<8x64xf32>
    %38 = math.tanh %37 : vector<8x64xf32>
    %39 = vector.extract_strided_slice %38 {offsets = [1, 32], sizes = [1, 32], strides = [1, 1]} : vector<8x64xf32> to vector<1x32xf32>
    %c3 = arith.constant 3 : index
    %c0_19 = arith.constant 0 : index
    %40 = vector.load %arg9[%c3, %c0_19] : memref<8x32xf32, #tpu.memory_space<vmem>>, vector<1x32xf32>
    tpu.vector_store %arg9[%c3, %c0_19], %39 {strides = array<i32>} : memref<8x32xf32, #tpu.memory_space<vmem>>, vector<1x32xf32>,
    %cst_20 = arith.constant dense<0.000000e+00> : vector<8x64xf32>
    %41 = tpu.matmul %38, %12, %cst_20 {dimension_numbers = #tpu.dot_dimension_numbers<[1], [0], [0], [1], [0, 0, 1, 1], [], []>} : vector<8x64xf32>, vector<64x64xf32>, vector<8x64xf32> -> vector<8x64xf32>
    %42 = vector.extract_strided_slice %11 {offsets = [40, 0], sizes = [8, 64], strides = [1, 1]} : vector<72x64xf32> to vector<8x64xf32>
    %43 = arith.addf %41, %42 : vector<8x64xf32>
    %44 = math.tanh %43 : vector<8x64xf32>
    %45 = vector.extract_strided_slice %44 {offsets = [1, 32], sizes = [1, 32], strides = [1, 1]} : vector<8x64xf32> to vector<1x32xf32>
    %c4 = arith.constant 4 : index
    %c0_21 = arith.constant 0 : index
    %46 = vector.load %arg9[%c4, %c0_21] : memref<8x32xf32, #tpu.memory_space<vmem>>, vector<1x32xf32>
    tpu.vector_store %arg9[%c4, %c0_21], %45 {strides = array<i32>} : memref<8x32xf32, #tpu.memory_space<vmem>>, vector<1x32xf32>,
    %cst_22 = arith.constant dense<0.000000e+00> : vector<8x64xf32>
    %47 = tpu.matmul %44, %12, %cst_22 {dimension_numbers = #tpu.dot_dimension_numbers<[1], [0], [0], [1], [0, 0, 1, 1], [], []>} : vector<8x64xf32>, vector<64x64xf32>, vector<8x64xf32> -> vector<8x64xf32>
    %48 = vector.extract_strided_slice %11 {offsets = [48, 0], sizes = [8, 64], strides = [1, 1]} : vector<72x64xf32> to vector<8x64xf32>
    %49 = arith.addf %47, %48 : vector<8x64xf32>
    %50 = math.tanh %49 : vector<8x64xf32>
    %51 = vector.extract_strided_slice %50 {offsets = [1, 32], sizes = [1, 32], strides = [1, 1]} : vector<8x64xf32> to vector<1x32xf32>
    %c5 = arith.constant 5 : index
    %c0_23 = arith.constant 0 : index
    %52 = vector.load %arg9[%c5, %c0_23] : memref<8x32xf32, #tpu.memory_space<vmem>>, vector<1x32xf32>
    tpu.vector_store %arg9[%c5, %c0_23], %51 {strides = array<i32>} : memref<8x32xf32, #tpu.memory_space<vmem>>, vector<1x32xf32>,
    %cst_24 = arith.constant dense<0.000000e+00> : vector<8x64xf32>
    %53 = tpu.matmul %50, %12, %cst_24 {dimension_numbers = #tpu.dot_dimension_numbers<[1], [0], [0], [1], [0, 0, 1, 1], [], []>} : vector<8x64xf32>, vector<64x64xf32>, vector<8x64xf32> -> vector<8x64xf32>
    %54 = vector.extract_strided_slice %11 {offsets = [56, 0], sizes = [8, 64], strides = [1, 1]} : vector<72x64xf32> to vector<8x64xf32>
    %55 = arith.addf %53, %54 : vector<8x64xf32>
    %56 = math.tanh %55 : vector<8x64xf32>
    %57 = vector.extract_strided_slice %56 {offsets = [1, 32], sizes = [1, 32], strides = [1, 1]} : vector<8x64xf32> to vector<1x32xf32>
    %c6 = arith.constant 6 : index
    %c0_25 = arith.constant 0 : index
    %58 = vector.load %arg9[%c6, %c0_25] : memref<8x32xf32, #tpu.memory_space<vmem>>, vector<1x32xf32>
    tpu.vector_store %arg9[%c6, %c0_25], %57 {strides = array<i32>} : memref<8x32xf32, #tpu.memory_space<vmem>>, vector<1x32xf32>,
    %cst_26 = arith.constant dense<0.000000e+00> : vector<8x64xf32>
    %59 = tpu.matmul %56, %12, %cst_26 {dimension_numbers = #tpu.dot_dimension_numbers<[1], [0], [0], [1], [0, 0, 1, 1], [], []>} : vector<8x64xf32>, vector<64x64xf32>, vector<8x64xf32> -> vector<8x64xf32>
    %60 = vector.extract_strided_slice %11 {offsets = [64, 0], sizes = [8, 64], strides = [1, 1]} : vector<72x64xf32> to vector<8x64xf32>
    %61 = arith.addf %59, %60 : vector<8x64xf32>
    %62 = math.tanh %61 : vector<8x64xf32>
    %63 = vector.extract_strided_slice %62 {offsets = [1, 32], sizes = [1, 32], strides = [1, 1]} : vector<8x64xf32> to vector<1x32xf32>
    %c7 = arith.constant 7 : index
    %c0_27 = arith.constant 0 : index
    %64 = vector.load %arg9[%c7, %c0_27] : memref<8x32xf32, #tpu.memory_space<vmem>>, vector<1x32xf32>
    tpu.vector_store %arg9[%c7, %c0_27], %63 {strides = array<i32>} : memref<8x32xf32, #tpu.memory_space<vmem>>, vector<1x32xf32>,
    %c0_28 = arith.constant 0 : index
    %c0_29 = arith.constant 0 : index
    %65 = vector.load %arg9[%c0_28, %c0_29] : memref<8x32xf32, #tpu.memory_space<vmem>>, vector<8x32xf32>
    %c0_30 = arith.constant 0 : index
    %c0_31 = arith.constant 0 : index
    %66 = vector.load %arg6[%c0_30, %c0_31] : memref<32x8xf32, #tpu.memory_space<vmem>>, vector<32x8xf32>
    %cst_32 = arith.constant dense<0.000000e+00> : vector<8x8xf32>
    %67 = tpu.matmul %65, %66, %cst_32 {dimension_numbers = #tpu.dot_dimension_numbers<[1], [0], [0], [1], [0, 0, 1, 1], [], []>} : vector<8x32xf32>, vector<32x8xf32>, vector<8x8xf32> -> vector<8x8xf32>
    %c0_33 = arith.constant 0 : index
    %c0_34 = arith.constant 0 : index
    %68 = vector.load %arg7[%c0_33, %c0_34] : memref<1x8xf32, #tpu.memory_space<vmem>>, vector<1x8xf32>
    %69 = vector.broadcast %68 : vector<1x8xf32> to vector<8x8xf32>
    %70 = arith.addf %67, %69 : vector<8x8xf32>
    %c0_35 = arith.constant 0 : index
    %c0_36 = arith.constant 0 : index
    %71 = vector.load %arg8[%c0_35, %c0_36] : memref<8x8xf32, #tpu.memory_space<vmem>>, vector<8x8xf32>
    tpu.vector_store %arg8[%c0_35, %c0_36], %70 {strides = array<i32>} : memref<8x8xf32, #tpu.memory_space<vmem>>, vector<8x8xf32>,
    return
  }
  func.func @transform_0(%arg0: i32) -> (i32, i32) {
    %c0_i32 = arith.constant 0 : i32
    %c0_i32_0 = arith.constant 0 : i32
    %c0_i32_1 = arith.constant 0 : i32
    return %c0_i32, %c0_i32_0 : i32, i32
  }
  func.func @transform_1(%arg0: i32) -> (i32, i32) {
    %c0_i32 = arith.constant 0 : i32
    %c0_i32_0 = arith.constant 0 : i32
    %c0_i32_1 = arith.constant 0 : i32
    return %c0_i32, %c0_i32_0 : i32, i32
  }
  func.func @transform_2(%arg0: i32) -> (i32, i32) {
    %c0_i32 = arith.constant 0 : i32
    %c0_i32_0 = arith.constant 0 : i32
    %c0_i32_1 = arith.constant 0 : i32
    return %c0_i32, %c0_i32_0 : i32, i32
  }
  func.func @transform_3(%arg0: i32) -> (i32, i32) {
    %c0_i32 = arith.constant 0 : i32
    %c0_i32_0 = arith.constant 0 : i32
    %c0_i32_1 = arith.constant 0 : i32
    return %c0_i32, %c0_i32_0 : i32, i32
  }
  func.func @transform_4(%arg0: i32) -> (i32, i32) {
    %c0_i32 = arith.constant 0 : i32
    %c0_i32_0 = arith.constant 0 : i32
    %c0_i32_1 = arith.constant 0 : i32
    return %c0_i32, %c0_i32_0 : i32, i32
  }
  func.func @transform_5(%arg0: i32) -> (i32, i32) {
    %c0_i32 = arith.constant 0 : i32
    %c0_i32_0 = arith.constant 0 : i32
    %c0_i32_1 = arith.constant 0 : i32
    return %c0_i32, %c0_i32_0 : i32, i32
  }
  func.func @transform_6(%arg0: i32) -> (i32, i32) {
    %c0_i32 = arith.constant 0 : i32
    %c0_i32_0 = arith.constant 0 : i32
    %c0_i32_1 = arith.constant 0 : i32
    return %c0_i32, %c0_i32_0 : i32, i32
  }
  func.func @transform_7(%arg0: i32) -> (i32, i32) {
    %c0_i32 = arith.constant 0 : i32
    %c0_i32_0 = arith.constant 0 : i32
    %c0_i32_1 = arith.constant 0 : i32
    return %c0_i32, %c0_i32_0 : i32, i32
  }
}

</mosaic_0001>

<llo_original>
// kernel: tpu_custom_call.1
$region0: #{tpu_custom_call.1}
  #allocation0 [shape = 'u32[]', space=smem, size = 0x4, offset = 0x4, fixed_abs, tag = 'smem constant byte address 0x4 - core index']
  #allocation1 [shape = 'u32[144,128]{1,0:T(1,128)}', space=vmem, size = 0x12000, scoped, tag = 'internal scratch']
  #allocation2 [shape = 'f32[8,32]{1,0:T(8,128)}', space=vmem, size = 0x1000, scoped, tag = 'scratch operand']
  %s0 = inlined_call_operand.vmem [shape: f32[64,16], index: 0, kind: input, shape index: {}]
  %s1 = inlined_call_operand.vmem [shape: f32[16,32], index: 1, kind: input, shape index: {}]
  %s2 = inlined_call_operand.vmem [shape: f32[1,32], index: 2, kind: input, shape index: {}]
  %s3 = inlined_call_operand.vmem [shape: f32[64,64], index: 3, kind: input, shape index: {}]
  %s4 = inlined_call_operand.vmem [shape: f32[1,32], index: 4, kind: input, shape index: {}]
  %s5 = inlined_call_operand.vmem [shape: f32[32,8], index: 5, kind: input, shape index: {}]
  %s6 = inlined_call_operand.vmem [shape: f32[1,8], index: 6, kind: input, shape index: {}]
  %s7 = inlined_call_operand.hbm [shape: f32[8,8], index: 7, kind: output, shape index: {}]
  %s8 = sld [smem:[#allocation0]]
  $region38: #{tpu_custom_call.1} parent=0
    _
  %s10 = ssub.s32 1, %s8
  %s11 = scalar_select 0, %s10, %s8
  $region1: #{tpu_custom_call.1} parent=0
    #allocation3 [shape = 'u8[4096]{0}', space=vmem, size = 0x1000, scoped, tag = 'output window, operand 0, single buffered']
    #allocation4 [shape = 's32[1]{0}', space=sflag, size = 0x4, scoped, tag = 'scoped memory for tpu_custom_call.1']
    %12 = vsyncpa [#allocation4], 0
    // Predicated region
    $region2: #{tpu_custom_call.1} parent=1 // pred_check
      _
    $region3: #{tpu_custom_call.1} parent=1 // pred_check_branch
      %14 = sbr.rel (0) target = $region5
    $region4: #{tpu_custom_call.1} parent=1 // pred_region
      _
    $region5: #{tpu_custom_call.1} parent=1 // pred_fallthru
      _
    // Predicated region
    $region6: #{tpu_custom_call.1} parent=1 // pred_check
      _
    $region7: #{tpu_custom_call.1} parent=1 // pred_check_branch
      %16 = sbr.rel (0) target = $region9
    $region8: #{tpu_custom_call.1} parent=1 // pred_region
      _
    $region9: #{tpu_custom_call.1} parent=1 // pred_fallthru
      _
    // Predicated region
    $region10: #{tpu_custom_call.1} parent=1 // pred_check
      _
    $region11: #{tpu_custom_call.1} parent=1 // pred_check_branch
      %18 = sbr.rel (0) target = $region13
    $region12: #{tpu_custom_call.1} parent=1 // pred_region
      _
    $region13: #{tpu_custom_call.1} parent=1 // pred_fallthru
      _
    // Predicated region
    $region14: #{tpu_custom_call.1} parent=1 // pred_check
      _
    $region15: #{tpu_custom_call.1} parent=1 // pred_check_branch
      %20 = sbr.rel (0) target = $region17
    $region16: #{tpu_custom_call.1} parent=1 // pred_region
      _
    $region17: #{tpu_custom_call.1} parent=1 // pred_fallthru
      _
    // Predicated region
    $region18: #{tpu_custom_call.1} parent=1 // pred_check
      _
    $region19: #{tpu_custom_call.1} parent=1 // pred_check_branch
      %22 = sbr.rel (0) target = $region21
    $region20: #{tpu_custom_call.1} parent=1 // pred_region
      _
    $region21: #{tpu_custom_call.1} parent=1 // pred_fallthru
      _
    // Predicated region
    $region22: #{tpu_custom_call.1} parent=1 // pred_check
      _
    $region23: #{tpu_custom_call.1} parent=1 // pred_check_branch
      %24 = sbr.rel (0) target = $region25
    $region24: #{tpu_custom_call.1} parent=1 // pred_region
      _
    $region25: #{tpu_custom_call.1} parent=1 // pred_fallthru
      _
    // Predicated region
    $region26: #{tpu_custom_call.1} parent=1 // pred_check
      _
    $region27: #{tpu_custom_call.1} parent=1 // pred_check_branch
      %26 = sbr.rel (0) target = $region29
    $region28: #{tpu_custom_call.1} parent=1 // pred_region
      _
    $region29: #{tpu_custom_call.1} parent=1 // pred_fallthru
      _
    %v27 = vld [vmem:[%s0] sm:$0xff]
    %v28 = vld [vmem:[%s0 + $0x8] sm:$0xff]
    %v29 = vld [vmem:[%s0 + $0x10] sm:$0xff]
    %v30 = vld [vmem:[%s0 + $0x18] sm:$0xff]
    %v31 = vld [vmem:[%s0 + $0x20] sm:$0xff]
    %v32 = vld [vmem:[%s0 + $0x28] sm:$0xff]
    %v33 = vld [vmem:[%s0 + $0x30] sm:$0xff]
    %v34 = vld [vmem:[%s0 + $0x38] sm:$0xff]
    %v35 = vld [vmem:[%s1] sm:$0xff]
    %v36 = vld [vmem:[%s1 + $0x8] sm:$0xff]
    %v37 = vld [vmem:[%s2] sm:$0x1]
    %v39 = vlaneseq
    %v40 = vshrl.u32 %v39, 7
    %v41 = vsub.s32 0, %v40
    %v42 = vrot.slane %v37, %v41
    %vm44 = vcmask 130048
    %v46 = vsel %vm44, %v27, 0
    %v49 = vsel %vm44, %v28, 0
    %v52 = vsel %vm44, %v29, 0
    %v55 = vsel %vm44, %v30, 0
    %v58 = vsel %vm44, %v31, 0
    %v61 = vsel %vm44, %v32, 0
    %v64 = vsel %vm44, %v33, 0
    %v67 = vsel %vm44, %v34, 0
    %69 = vmatprep.subr.mxu0 0.0
    %70 = vmatpush1.msra.mxu0 %v35
    %71 = vmatprep.subr.mxu0 0.0
    %72 = vmatpush1.msra.mxu0 %v36
    %73 = vmatprep.subr.mxu0 0.0
    %74 = vmatpush1.msra.mxu0 0.0
    %75 = vmatprep.subr.mxu0 0.0
    %76 = vmatpush1.msra.mxu0 0.0
    %77 = vmatprep.subr.mxu0 0.0
    %78 = vmatpush1.msra.mxu0 0.0
    %79 = vmatprep.subr.mxu0 0.0
    %80 = vmatpush1.msra.mxu0 0.0
    %81 = vmatprep.subr.mxu0 0.0
    %82 = vmatpush1.msra.mxu0 0.0
    %83 = vmatprep.subr.mxu0 0.0
    %84 = vmatpush1.msra.mxu0 0.0
    %85 = vmatprep.subr.mxu0 0.0
    %86 = vmatpush1.msra.mxu0 0.0
    %87 = vmatprep.subr.mxu0 0.0
    %88 = vmatpush1.msra.mxu0 0.0
    %89 = vmatprep.subr.mxu0 0.0
    %90 = vmatpush1.msra.mxu0 0.0
    %91 = vmatprep.subr.mxu0 0.0
    %92 = vmatpush1.msra.mxu0 0.0
    %93 = vmatprep.subr.mxu0 0.0
    %94 = vmatpush1.msra.mxu0 0.0
    %95 = vmatprep.subr.mxu0 0.0
    %96 = vmatpush1.msra.mxu0 0.0
    %97 = vmatprep.subr.mxu0 0.0
    %98 = vmatpush1.msra.mxu0 0.0
    %99 = vmatprep.subr.mxu0 0.0
    %100 = vmatpush1.msra.mxu0 0.0
    %101 = vmatprep.subr.mxu0 0.0
    %102 = vmatpush1.msra.mxu0 0.0
    %103 = vmatprep.subr.mxu0 0.0
    %104 = vmatpush1.msra.mxu0 0.0
    %105 = vmatprep.subr.mxu0 0.0
    %106 = vmatpush1.msra.mxu0 0.0
    %107 = vmatprep.subr.mxu0 0.0
    %108 = vmatpush1.msra.mxu0 0.0
    %109 = vmatprep.subr.mxu0 0.0
    %110 = vmatpush1.msra.mxu0 0.0
    %111 = vmatprep.subr.mxu0 0.0
    %112 = vmatpush1.msra.mxu0 0.0
    %113 = vmatprep.subr.mxu0 0.0
    %114 = vmatpush1.msra.mxu0 0.0
    %115 = vmatprep.subr.mxu0 0.0
    %116 = vmatpush1.msra.mxu0 0.0
    %117 = vmatprep.subr.mxu0 0.0
    %118 = vmatpush1.msra.mxu0 0.0
    %119 = vmatprep.subr.mxu0 0.0
    %120 = vmatpush1.msra.mxu0 0.0
    %121 = vmatprep.subr.mxu0 0.0
    %122 = vmatpush1.msra.mxu0 0.0
    %123 = vmatprep.subr.mxu0 0.0
    %124 = vmatpush1.msra.mxu0 0.0
    %125 = vmatprep.subr.mxu0 0.0
    %126 = vmatpush1.msra.mxu0 0.0
    %127 = vmatprep.subr.mxu0 0.0
    %128 = vmatpush1.msra.mxu0 0.0
    %129 = vmatprep.subr.mxu0 0.0
    %130 = vmatpush1.msra.mxu0 0.0
    %131 = vmatprep.subr.mxu0 0.0
    %132 = vmatpush1.msra.mxu0 0.0
    %133 = vmatprep.mubr.f32.mxu0 0.0
    %134 = vmatmul.mubr.f32.gmra.mrb[0].mxu0 %v46
    %v135 = vpop.f32.mrb[0].mxu0
    %v136 = vadd.f32 %v42, %v135
    %v137 = vpop.f32.mrb[0].mxu0
    %138 = vmatprep.mubr.f32.mxu0 0.0
    %139 = vmatmul.mubr.f32.gmra.mrb[0].mxu0 %v49
    %v140 = vpop.f32.mrb[0].mxu0
    %v141 = vadd.f32 %v42, %v140
    %v142 = vpop.f32.mrb[0].mxu0
    %143 = vmatprep.mubr.f32.mxu0 0.0
    %144 = vmatmul.mubr.f32.gmra.mrb[0].mxu0 %v52
    %v145 = vpop.f32.mrb[0].mxu0
    %v146 = vadd.f32 %v42, %v145
    %v147 = vpop.f32.mrb[0].mxu0
    %148 = vmatprep.mubr.f32.mxu0 0.0
    %149 = vmatmul.mubr.f32.gmra.mrb[0].mxu0 %v55
    %v150 = vpop.f32.mrb[0].mxu0
    %v151 = vadd.f32 %v42, %v150
    %v152 = vpop.f32.mrb[0].mxu0
    %153 = vmatprep.mubr.f32.mxu0 0.0
    %154 = vmatmul.mubr.f32.gmra.mrb[0].mxu0 %v58
    %v155 = vpop.f32.mrb[0].mxu0
    %v156 = vadd.f32 %v42, %v155
    %v157 = vpop.f32.mrb[0].mxu0
    %158 = vmatprep.mubr.f32.mxu0 0.0
    %159 = vmatmul.mubr.f32.gmra.mrb[0].mxu0 %v61
    %v160 = vpop.f32.mrb[0].mxu0
    %v161 = vadd.f32 %v42, %v160
    %v162 = vpop.f32.mrb[0].mxu0
    %163 = vmatprep.mubr.f32.mxu0 0.0
    %164 = vmatmul.mubr.f32.gmra.mrb[0].mxu0 %v64
    %v165 = vpop.f32.mrb[0].mxu0
    %v166 = vadd.f32 %v42, %v165
    %v167 = vpop.f32.mrb[0].mxu0
    %168 = vmatprep.mubr.f32.mxu0 0.0
    %169 = vmatmul.mubr.f32.gmra.mrb[0].mxu0 %v67
    %v170 = vpop.f32.mrb[0].mxu0
    %v171 = vadd.f32 %v42, %v170
    %v172 = vpop.f32.mrb[0].mxu0
    %173 = vdwg.mxu0
    %v174 = vld [vmem:[%s4] sm:$0x1]
    %v176 = vlaneseq
    %v177 = vshrl.u32 %v176, 7
    %v178 = vsub.s32 0, %v177
    %v179 = vrot.slane %v174, %v178
    %180 = vrot.lane.b32.xlu0 %v179, 32
    %v181 = vpop.permute.xlu0 %180
    %vm183 = vcmask 261120
    %v184 = vsel %vm183, %v141, %v181
    %v185 = vsel %vm183, %v146, %v181
    %v186 = vsel %vm183, %v151, %v181
    %v187 = vsel %vm183, %v156, %v181
    %v188 = vsel %vm183, %v161, %v181
    %v189 = vsel %vm183, %v166, %v181
    %v190 = vsel %vm183, %v171, %v181
    %v191 = vsel %vm183, 0.0, %v181
    %v192 = vld [vmem:[%s3] sm:$0xff]
    %v193 = vld [vmem:[%s3 + $0x8] sm:$0xff]
    %v194 = vld [vmem:[%s3 + $0x10] sm:$0xff]
    %v195 = vld [vmem:[%s3 + $0x18] sm:$0xff]
    %v196 = vld [vmem:[%s3 + $0x20] sm:$0xff]
    %v197 = vld [vmem:[%s3 + $0x28] sm:$0xff]
    %v198 = vld [vmem:[%s3 + $0x30] sm:$0xff]
    %v199 = vld [vmem:[%s3 + $0x38] sm:$0xff]
    %v200 = vtanh.pop %v136
    %v201 = vsel %vm183, %v200, 0.0
    %vm202 = vcmask 523264
    %v204 = vsel %vm202, %v201, 0
    %206 = vmatprep.subr.mxu0 0.0
    %207 = vmatpush1.msra.mxu0 %v192
    %208 = vmatprep.subr.mxu0 0.0
    %209 = vmatpush1.msra.mxu0 %v193
    %210 = vmatprep.subr.mxu0 0.0
    %211 = vmatpush1.msra.mxu0 %v194
    %212 = vmatprep.subr.mxu0 0.0
    %213 = vmatpush1.msra.mxu0 %v195
    %214 = vmatprep.subr.mxu0 0.0
    %215 = vmatpush1.msra.mxu0 %v196
    %216 = vmatprep.subr.mxu0 0.0
    %217 = vmatpush1.msra.mxu0 %v197
    %218 = vmatprep.subr.mxu0 0.0
    %219 = vmatpush1.msra.mxu0 %v198
    %220 = vmatprep.subr.mxu0 0.0
    %221 = vmatpush1.msra.mxu0 %v199
    %222 = vmatprep.subr.mxu0 0.0
    %223 = vmatpush1.msra.mxu0 0.0
    %224 = vmatprep.subr.mxu0 0.0
    %225 = vmatpush1.msra.mxu0 0.0
    %226 = vmatprep.subr.mxu0 0.0
    %227 = vmatpush1.msra.mxu0 0.0
    %228 = vmatprep.subr.mxu0 0.0
    %229 = vmatpush1.msra.mxu0 0.0
    %230 = vmatprep.subr.mxu0 0.0
    %231 = vmatpush1.msra.mxu0 0.0
    %232 = vmatprep.subr.mxu0 0.0
    %233 = vmatpush1.msra.mxu0 0.0
    %234 = vmatprep.subr.mxu0 0.0
    %235 = vmatpush1.msra.mxu0 0.0
    %236 = vmatprep.subr.mxu0 0.0
    %237 = vmatpush1.msra.mxu0 0.0
    %238 = vmatprep.subr.mxu0 0.0
    %239 = vmatpush1.msra.mxu0 0.0
    %240 = vmatprep.subr.mxu0 0.0
    %241 = vmatpush1.msra.mxu0 0.0
    %242 = vmatprep.subr.mxu0 0.0
    %243 = vmatpush1.msra.mxu0 0.0
    %244 = vmatprep.subr.mxu0 0.0
    %245 = vmatpush1.msra.mxu0 0.0
    %246 = vmatprep.subr.mxu0 0.0
    %247 = vmatpush1.msra.mxu0 0.0
    %248 = vmatprep.subr.mxu0 0.0
    %249 = vmatpush1.msra.mxu0 0.0
    %250 = vmatprep.subr.mxu0 0.0
    %251 = vmatpush1.msra.mxu0 0.0
    %252 = vmatprep.subr.mxu0 0.0
    %253 = vmatpush1.msra.mxu0 0.0
    %254 = vmatprep.subr.mxu0 0.0
    %255 = vmatpush1.msra.mxu0 0.0
    %256 = vmatprep.subr.mxu0 0.0
    %257 = vmatpush1.msra.mxu0 0.0
    %258 = vmatprep.subr.mxu0 0.0
    %259 = vmatpush1.msra.mxu0 0.0
    %260 = vmatprep.subr.mxu0 0.0
    %261 = vmatpush1.msra.mxu0 0.0
    %262 = vmatprep.subr.mxu0 0.0
    %263 = vmatpush1.msra.mxu0 0.0
    %264 = vmatprep.subr.mxu0 0.0
    %265 = vmatpush1.msra.mxu0 0.0
    %266 = vmatprep.subr.mxu0 0.0
    %267 = vmatpush1.msra.mxu0 0.0
    %268 = vmatprep.subr.mxu0 0.0
    %269 = vmatpush1.msra.mxu0 0.0
    %270 = vmatprep.mubr.f32.mxu0 0.0
    %271 = vmatmul.mubr.f32.gmra.mrb[0].mxu0 %v204
    %v272 = vpop.f32.mrb[0].mxu0
    %v273 = vadd.f32 %v184, %v272
    %v274 = vpop.f32.mrb[0].mxu0
    %275 = vdwg.mxu0
    %v276 = vtanh.pop %v273
    %278 = vrot.lane.b32.xlu0 %v276, 96
    %v279 = vpop.permute.xlu0 %278
    %vm281 = vcmask 254977
    %282 = vst.msk [vmem:[#allocation2 - $0x1] sm:$0x2] %vm281, %v279
    %v283 = vsel %vm202, %v276, 0
    %285 = vmatprep.subr.mxu0 0.0
    %286 = vmatpush1.msra.mxu0 %v192
    %287 = vmatprep.subr.mxu0 0.0
    %288 = vmatpush1.msra.mxu0 %v193
    %289 = vmatprep.subr.mxu0 0.0
    %290 = vmatpush1.msra.mxu0 %v194
    %291 = vmatprep.subr.mxu0 0.0
    %292 = vmatpush1.msra.mxu0 %v195
    %293 = vmatprep.subr.mxu0 0.0
    %294 = vmatpush1.msra.mxu0 %v196
    %295 = vmatprep.subr.mxu0 0.0
    %296 = vmatpush1.msra.mxu0 %v197
    %297 = vmatprep.subr.mxu0 0.0
    %298 = vmatpush1.msra.mxu0 %v198
    %299 = vmatprep.subr.mxu0 0.0
    %300 = vmatpush1.msra.mxu0 %v199
    %301 = vmatprep.subr.mxu0 0.0
    %302 = vmatpush1.msra.mxu0 0.0
    %303 = vmatprep.subr.mxu0 0.0
    %304 = vmatpush1.msra.mxu0 0.0
    %305 = vmatprep.subr.mxu0 0.0
    %306 = vmatpush1.msra.mxu0 0.0
    %307 = vmatprep.subr.mxu0 0.0
    %308 = vmatpush1.msra.mxu0 0.0
    %309 = vmatprep.subr.mxu0 0.0
    %310 = vmatpush1.msra.mxu0 0.0
    %311 = vmatprep.subr.mxu0 0.0
    %312 = vmatpush1.msra.mxu0 0.0
    %313 = vmatprep.subr.mxu0 0.0
    %314 = vmatpush1.msra.mxu0 0.0
    %315 = vmatprep.subr.mxu0 0.0
    %316 = vmatpush1.msra.mxu0 0.0
    %317 = vmatprep.subr.mxu0 0.0
    %318 = vmatpush1.msra.mxu0 0.0
    %319 = vmatprep.subr.mxu0 0.0
    %320 = vmatpush1.msra.mxu0 0.0
    %321 = vmatprep.subr.mxu0 0.0
    %322 = vmatpush1.msra.mxu0 0.0
    %323 = vmatprep.subr.mxu0 0.0
    %324 = vmatpush1.msra.mxu0 0.0
    %325 = vmatprep.subr.mxu0 0.0
    %326 = vmatpush1.msra.mxu0 0.0
    %327 = vmatprep.subr.mxu0 0.0
    %328 = vmatpush1.msra.mxu0 0.0
    %329 = vmatprep.subr.mxu0 0.0
    %330 = vmatpush1.msra.mxu0 0.0
    %331 = vmatprep.subr.mxu0 0.0
    %332 = vmatpush1.msra.mxu0 0.0
    %333 = vmatprep.subr.mxu0 0.0
    %334 = vmatpush1.msra.mxu0 0.0
    %335 = vmatprep.subr.mxu0 0.0
    %336 = vmatpush1.msra.mxu0 0.0
    %337 = vmatprep.subr.mxu0 0.0
    %338 = vmatpush1.msra.mxu0 0.0
    %339 = vmatprep.subr.mxu0 0.0
    %340 = vmatpush1.msra.mxu0 0.0
    %341 = vmatprep.subr.mxu0 0.0
    %342 = vmatpush1.msra.mxu0 0.0
    %343 = vmatprep.subr.mxu0 0.0
    %344 = vmatpush1.msra.mxu0 0.0
    %345 = vmatprep.subr.mxu0 0.0
    %346 = vmatpush1.msra.mxu0 0.0
    %347 = vmatprep.subr.mxu0 0.0
    %348 = vmatpush1.msra.mxu0 0.0
    %349 = vmatprep.mubr.f32.mxu0 0.0
    %350 = vmatmul.mubr.f32.gmra.mrb[0].mxu0 %v283
    %v351 = vpop.f32.mrb[0].mxu0
    %v352 = vadd.f32 %v185, %v351
    %v353 = vpop.f32.mrb[0].mxu0
    %354 = vdwg.mxu0
    %v355 = vtanh.pop %v352
    %357 = vrot.lane.b32.xlu0 %v355, 96
    %v358 = vpop.permute.xlu0 %357
    %360 = vst.msk [vmem:[#allocation2] sm:$0x2] %vm281, %v358
    %v361 = vsel %vm202, %v355, 0
    %363 = vmatprep.subr.mxu0 0.0
    %364 = vmatpush1.msra.mxu0 %v192
    %365 = vmatprep.subr.mxu0 0.0
    %366 = vmatpush1.msra.mxu0 %v193
    %367 = vmatprep.subr.mxu0 0.0
    %368 = vmatpush1.msra.mxu0 %v194
    %369 = vmatprep.subr.mxu0 0.0
    %370 = vmatpush1.msra.mxu0 %v195
    %371 = vmatprep.subr.mxu0 0.0
    %372 = vmatpush1.msra.mxu0 %v196
    %373 = vmatprep.subr.mxu0 0.0
    %374 = vmatpush1.msra.mxu0 %v197
    %375 = vmatprep.subr.mxu0 0.0
    %376 = vmatpush1.msra.mxu0 %v198
    %377 = vmatprep.subr.mxu0 0.0
    %378 = vmatpush1.msra.mxu0 %v199
    %379 = vmatprep.subr.mxu0 0.0
    %380 = vmatpush1.msra.mxu0 0.0
    %381 = vmatprep.subr.mxu0 0.0
    %382 = vmatpush1.msra.mxu0 0.0
    %383 = vmatprep.subr.mxu0 0.0
    %384 = vmatpush1.msra.mxu0 0.0
    %385 = vmatprep.subr.mxu0 0.0
    %386 = vmatpush1.msra.mxu0 0.0
    %387 = vmatprep.subr.mxu0 0.0
    %388 = vmatpush1.msra.mxu0 0.0
    %389 = vmatprep.subr.mxu0 0.0
    %390 = vmatpush1.msra.mxu0 0.0
    %391 = vmatprep.subr.mxu0 0.0
    %392 = vmatpush1.msra.mxu0 0.0
    %393 = vmatprep.subr.mxu0 0.0
    %394 = vmatpush1.msra.mxu0 0.0
    %395 = vmatprep.subr.mxu0 0.0
    %396 = vmatpush1.msra.mxu0 0.0
    %397 = vmatprep.subr.mxu0 0.0
    %398 = vmatpush1.msra.mxu0 0.0
    %399 = vmatprep.subr.mxu0 0.0
    %400 = vmatpush1.msra.mxu0 0.0
    %401 = vmatprep.subr.mxu0 0.0
    %402 = vmatpush1.msra.mxu0 0.0
    %403 = vmatprep.subr.mxu0 0.0
    %404 = vmatpush1.msra.mxu0 0.0
    %405 = vmatprep.subr.mxu0 0.0
    %406 = vmatpush1.msra.mxu0 0.0
    %407 = vmatprep.subr.mxu0 0.0
    %408 = vmatpush1.msra.mxu0 0.0
    %409 = vmatprep.subr.mxu0 0.0
    %410 = vmatpush1.msra.mxu0 0.0
    %411 = vmatprep.subr.mxu0 0.0
    %412 = vmatpush1.msra.mxu0 0.0
    %413 = vmatprep.subr.mxu0 0.0
    %414 = vmatpush1.msra.mxu0 0.0
    %415 = vmatprep.subr.mxu0 0.0
    %416 = vmatpush1.msra.mxu0 0.0
    %417 = vmatprep.subr.mxu0 0.0
    %418 = vmatpush1.msra.mxu0 0.0
    %419 = vmatprep.subr.mxu0 0.0
    %420 = vmatpush1.msra.mxu0 0.0
    %421 = vmatprep.subr.mxu0 0.0
    %422 = vmatpush1.msra.mxu0 0.0
    %423 = vmatprep.subr.mxu0 0.0
    %424 = vmatpush1.msra.mxu0 0.0
    %425 = vmatprep.subr.mxu0 0.0
    %426 = vmatpush1.msra.mxu0 0.0
    %427 = vmatprep.mubr.f32.mxu0 0.0
    %428 = vmatmul.mubr.f32.gmra.mrb[0].mxu0 %v361
    %v429 = vpop.f32.mrb[0].mxu0
    %v430 = vadd.f32 %v186, %v429
    %v431 = vpop.f32.mrb[0].mxu0
    %432 = vdwg.mxu0
    %v433 = vtanh.pop %v430
    %435 = vrot.lane.b32.xlu0 %v433, 96
    %v436 = vpop.permute.xlu0 %435
    %438 = vst.msk [vmem:[#allocation2 + $0x1] sm:$0x2] %vm281, %v436
    %v439 = vsel %vm202, %v433, 0
    %441 = vmatprep.subr.mxu0 0.0
    %442 = vmatpush1.msra.mxu0 %v192
    %443 = vmatprep.subr.mxu0 0.0
    %444 = vmatpush1.msra.mxu0 %v193
    %445 = vmatprep.subr.mxu0 0.0
    %446 = vmatpush1.msra.mxu0 %v194
    %447 = vmatprep.subr.mxu0 0.0
    %448 = vmatpush1.msra.mxu0 %v195
    %449 = vmatprep.subr.mxu0 0.0
    %450 = vmatpush1.msra.mxu0 %v196
    %451 = vmatprep.subr.mxu0 0.0
    %452 = vmatpush1.msra.mxu0 %v197
    %453 = vmatprep.subr.mxu0 0.0
    %454 = vmatpush1.msra.mxu0 %v198
    %455 = vmatprep.subr.mxu0 0.0
    %456 = vmatpush1.msra.mxu0 %v199
    %457 = vmatprep.subr.mxu0 0.0
    %458 = vmatpush1.msra.mxu0 0.0
    %459 = vmatprep.subr.mxu0 0.0
    %460 = vmatpush1.msra.mxu0 0.0
    %461 = vmatprep.subr.mxu0 0.0
    %462 = vmatpush1.msra.mxu0 0.0
    %463 = vmatprep.subr.mxu0 0.0
    %464 = vmatpush1.msra.mxu0 0.0
    %465 = vmatprep.subr.mxu0 0.0
    %466 = vmatpush1.msra.mxu0 0.0
    %467 = vmatprep.subr.mxu0 0.0
    %468 = vmatpush1.msra.mxu0 0.0
    %469 = vmatprep.subr.mxu0 0.0
    %470 = vmatpush1.msra.mxu0 0.0
    %471 = vmatprep.subr.mxu0 0.0
    %472 = vmatpush1.msra.mxu0 0.0
    %473 = vmatprep.subr.mxu0 0.0
    %474 = vmatpush1.msra.mxu0 0.0
    %475 = vmatprep.subr.mxu0 0.0
    %476 = vmatpush1.msra.mxu0 0.0
    %477 = vmatprep.subr.mxu0 0.0
    %478 = vmatpush1.msra.mxu0 0.0
    %479 = vmatprep.subr.mxu0 0.0
    %480 = vmatpush1.msra.mxu0 0.0
    %481 = vmatprep.subr.mxu0 0.0
    %482 = vmatpush1.msra.mxu0 0.0
    %483 = vmatprep.subr.mxu0 0.0
    %484 = vmatpush1.msra.mxu0 0.0
    %485 = vmatprep.subr.mxu0 0.0
    %486 = vmatpush1.msra.mxu0 0.0
    %487 = vmatprep.subr.mxu0 0.0
    %488 = vmatpush1.msra.mxu0 0.0
    %489 = vmatprep.subr.mxu0 0.0
    %490 = vmatpush1.msra.mxu0 0.0
    %491 = vmatprep.subr.mxu0 0.0
    %492 = vmatpush1.msra.mxu0 0.0
    %493 = vmatprep.subr.mxu0 0.0
    %494 = vmatpush1.msra.mxu0 0.0
    %495 = vmatprep.subr.mxu0 0.0
    %496 = vmatpush1.msra.mxu0 0.0
    %497 = vmatprep.subr.mxu0 0.0
    %498 = vmatpush1.msra.mxu0 0.0
    %499 = vmatprep.subr.mxu0 0.0
    %500 = vmatpush1.msra.mxu0 0.0
    %501 = vmatprep.subr.mxu0 0.0
    %502 = vmatpush1.msra.mxu0 0.0
    %503 = vmatprep.subr.mxu0 0.0
    %504 = vmatpush1.msra.mxu0 0.0
    %505 = vmatprep.mubr.f32.mxu0 0.0
    %506 = vmatmul.mubr.f32.gmra.mrb[0].mxu0 %v439
    %v507 = vpop.f32.mrb[0].mxu0
    %v508 = vadd.f32 %v187, %v507
    %v509 = vpop.f32.mrb[0].mxu0
    %510 = vdwg.mxu0
    %v511 = vtanh.pop %v508
    %513 = vrot.lane.b32.xlu0 %v511, 96
    %v514 = vpop.permute.xlu0 %513
    %516 = vst.msk [vmem:[#allocation2 + $0x2] sm:$0x2] %vm281, %v514
    %v517 = vsel %vm202, %v511, 0
    %519 = vmatprep.subr.mxu0 0.0
    %520 = vmatpush1.msra.mxu0 %v192
    %521 = vmatprep.subr.mxu0 0.0
    %522 = vmatpush1.msra.mxu0 %v193
    %523 = vmatprep.subr.mxu0 0.0
    %524 = vmatpush1.msra.mxu0 %v194
    %525 = vmatprep.subr.mxu0 0.0
    %526 = vmatpush1.msra.mxu0 %v195
    %527 = vmatprep.subr.mxu0 0.0
    %528 = vmatpush1.msra.mxu0 %v196
    %529 = vmatprep.subr.mxu0 0.0
    %530 = vmatpush1.msra.mxu0 %v197
    %531 = vmatprep.subr.mxu0 0.0
    %532 = vmatpush1.msra.mxu0 %v198
    %533 = vmatprep.subr.mxu0 0.0
    %534 = vmatpush1.msra.mxu0 %v199
    %535 = vmatprep.subr.mxu0 0.0
    %536 = vmatpush1.msra.mxu0 0.0
    %537 = vmatprep.subr.mxu0 0.0
    %538 = vmatpush1.msra.mxu0 0.0
    %539 = vmatprep.subr.mxu0 0.0
    %540 = vmatpush1.msra.mxu0 0.0
    %541 = vmatprep.subr.mxu0 0.0
    %542 = vmatpush1.msra.mxu0 0.0
    %543 = vmatprep.subr.mxu0 0.0
    %544 = vmatpush1.msra.mxu0 0.0
    %545 = vmatprep.subr.mxu0 0.0
    %546 = vmatpush1.msra.mxu0 0.0
    %547 = vmatprep.subr.mxu0 0.0
    %548 = vmatpush1.msra.mxu0 0.0
    %549 = vmatprep.subr.mxu0 0.0
    %550 = vmatpush1.msra.mxu0 0.0
    %551 = vmatprep.subr.mxu0 0.0
    %552 = vmatpush1.msra.mxu0 0.0
    %553 = vmatprep.subr.mxu0 0.0
    %554 = vmatpush1.msra.mxu0 0.0
    %555 = vmatprep.subr.mxu0 0.0
    %556 = vmatpush1.msra.mxu0 0.0
    %557 = vmatprep.subr.mxu0 0.0
    %558 = vmatpush1.msra.mxu0 0.0
    %559 = vmatprep.subr.mxu0 0.0
    %560 = vmatpush1.msra.mxu0 0.0
    %561 = vmatprep.subr.mxu0 0.0
    %562 = vmatpush1.msra.mxu0 0.0
    %563 = vmatprep.subr.mxu0 0.0
    %564 = vmatpush1.msra.mxu0 0.0
    %565 = vmatprep.subr.mxu0 0.0
    %566 = vmatpush1.msra.mxu0 0.0
    %567 = vmatprep.subr.mxu0 0.0
    %568 = vmatpush1.msra.mxu0 0.0
    %569 = vmatprep.subr.mxu0 0.0
    %570 = vmatpush1.msra.mxu0 0.0
    %571 = vmatprep.subr.mxu0 0.0
    %572 = vmatpush1.msra.mxu0 0.0
    %573 = vmatprep.subr.mxu0 0.0
    %574 = vmatpush1.msra.mxu0 0.0
    %575 = vmatprep.subr.mxu0 0.0
    %576 = vmatpush1.msra.mxu0 0.0
    %577 = vmatprep.subr.mxu0 0.0
    %578 = vmatpush1.msra.mxu0 0.0
    %579 = vmatprep.subr.mxu0 0.0
    %580 = vmatpush1.msra.mxu0 0.0
    %581 = vmatprep.subr.mxu0 0.0
    %582 = vmatpush1.msra.mxu0 0.0
    %583 = vmatprep.mubr.f32.mxu0 0.0
    %584 = vmatmul.mubr.f32.gmra.mrb[0].mxu0 %v517
    %v585 = vpop.f32.mrb[0].mxu0
    %v586 = vadd.f32 %v188, %v585
    %v587 = vpop.f32.mrb[0].mxu0
    %588 = vdwg.mxu0
    %v589 = vtanh.pop %v586
    %591 = vrot.lane.b32.xlu0 %v589, 96
    %v592 = vpop.permute.xlu0 %591
    %594 = vst.msk [vmem:[#allocation2 + $0x3] sm:$0x2] %vm281, %v592
    %v595 = vsel %vm202, %v589, 0
    %597 = vmatprep.subr.mxu0 0.0
    %598 = vmatpush1.msra.mxu0 %v192
    %599 = vmatprep.subr.mxu0 0.0
    %600 = vmatpush1.msra.mxu0 %v193
    %601 = vmatprep.subr.mxu0 0.0
    %602 = vmatpush1.msra.mxu0 %v194
    %603 = vmatprep.subr.mxu0 0.0
    %604 = vmatpush1.msra.mxu0 %v195
    %605 = vmatprep.subr.mxu0 0.0
    %606 = vmatpush1.msra.mxu0 %v196
    %607 = vmatprep.subr.mxu0 0.0
    %608 = vmatpush1.msra.mxu0 %v197
    %609 = vmatprep.subr.mxu0 0.0
    %610 = vmatpush1.msra.mxu0 %v198
    %611 = vmatprep.subr.mxu0 0.0
    %612 = vmatpush1.msra.mxu0 %v199
    %613 = vmatprep.subr.mxu0 0.0
    %614 = vmatpush1.msra.mxu0 0.0
    %615 = vmatprep.subr.mxu0 0.0
    %616 = vmatpush1.msra.mxu0 0.0
    %617 = vmatprep.subr.mxu0 0.0
    %618 = vmatpush1.msra.mxu0 0.0
    %619 = vmatprep.subr.mxu0 0.0
    %620 = vmatpush1.msra.mxu0 0.0
    %621 = vmatprep.subr.mxu0 0.0
    %622 = vmatpush1.msra.mxu0 0.0
    %623 = vmatprep.subr.mxu0 0.0
    %624 = vmatpush1.msra.mxu0 0.0
    %625 = vmatprep.subr.mxu0 0.0
    %626 = vmatpush1.msra.mxu0 0.0
    %627 = vmatprep.subr.mxu0 0.0
    %628 = vmatpush1.msra.mxu0 0.0
    %629 = vmatprep.subr.mxu0 0.0
    %630 = vmatpush1.msra.mxu0 0.0
    %631 = vmatprep.subr.mxu0 0.0
    %632 = vmatpush1.msra.mxu0 0.0
    %633 = vmatprep.subr.mxu0 0.0
    %634 = vmatpush1.msra.mxu0 0.0
    %635 = vmatprep.subr.mxu0 0.0
    %636 = vmatpush1.msra.mxu0 0.0
    %637 = vmatprep.subr.mxu0 0.0
    %638 = vmatpush1.msra.mxu0 0.0
    %639 = vmatprep.subr.mxu0 0.0
    %640 = vmatpush1.msra.mxu0 0.0
    %641 = vmatprep.subr.mxu0 0.0
    %642 = vmatpush1.msra.mxu0 0.0
    %643 = vmatprep.subr.mxu0 0.0
    %644 = vmatpush1.msra.mxu0 0.0
    %645 = vmatprep.subr.mxu0 0.0
    %646 = vmatpush1.msra.mxu0 0.0
    %647 = vmatprep.subr.mxu0 0.0
    %648 = vmatpush1.msra.mxu0 0.0
    %649 = vmatprep.subr.mxu0 0.0
    %650 = vmatpush1.msra.mxu0 0.0
    %651 = vmatprep.subr.mxu0 0.0
    %652 = vmatpush1.msra.mxu0 0.0
    %653 = vmatprep.subr.mxu0 0.0
    %654 = vmatpush1.msra.mxu0 0.0
    %655 = vmatprep.subr.mxu0 0.0
    %656 = vmatpush1.msra.mxu0 0.0
    %657 = vmatprep.subr.mxu0 0.0
    %658 = vmatpush1.msra.mxu0 0.0
    %659 = vmatprep.subr.mxu0 0.0
    %660 = vmatpush1.msra.mxu0 0.0
    %661 = vmatprep.mubr.f32.mxu0 0.0
    %662 = vmatmul.mubr.f32.gmra.mrb[0].mxu0 %v595
    %v663 = vpop.f32.mrb[0].mxu0
    %v664 = vadd.f32 %v189, %v663
    %v665 = vpop.f32.mrb[0].mxu0
    %666 = vdwg.mxu0
    %v667 = vtanh.pop %v664
    %669 = vrot.lane.b32.xlu0 %v667, 96
    %v670 = vpop.permute.xlu0 %669
    %672 = vst.msk [vmem:[#allocation2 + $0x4] sm:$0x2] %vm281, %v670
    %v673 = vsel %vm202, %v667, 0
    %675 = vmatprep.subr.mxu0 0.0
    %676 = vmatpush1.msra.mxu0 %v192
    %677 = vmatprep.subr.mxu0 0.0
    %678 = vmatpush1.msra.mxu0 %v193
    %679 = vmatprep.subr.mxu0 0.0
    %680 = vmatpush1.msra.mxu0 %v194
    %681 = vmatprep.subr.mxu0 0.0
    %682 = vmatpush1.msra.mxu0 %v195
    %683 = vmatprep.subr.mxu0 0.0
    %684 = vmatpush1.msra.mxu0 %v196
    %685 = vmatprep.subr.mxu0 0.0
    %686 = vmatpush1.msra.mxu0 %v197
    %687 = vmatprep.subr.mxu0 0.0
    %688 = vmatpush1.msra.mxu0 %v198
    %689 = vmatprep.subr.mxu0 0.0
    %690 = vmatpush1.msra.mxu0 %v199
    %691 = vmatprep.subr.mxu0 0.0
    %692 = vmatpush1.msra.mxu0 0.0
    %693 = vmatprep.subr.mxu0 0.0
    %694 = vmatpush1.msra.mxu0 0.0
    %695 = vmatprep.subr.mxu0 0.0
    %696 = vmatpush1.msra.mxu0 0.0
    %697 = vmatprep.subr.mxu0 0.0
    %698 = vmatpush1.msra.mxu0 0.0
    %699 = vmatprep.subr.mxu0 0.0
    %700 = vmatpush1.msra.mxu0 0.0
    %701 = vmatprep.subr.mxu0 0.0
    %702 = vmatpush1.msra.mxu0 0.0
    %703 = vmatprep.subr.mxu0 0.0
    %704 = vmatpush1.msra.mxu0 0.0
    %705 = vmatprep.subr.mxu0 0.0
    %706 = vmatpush1.msra.mxu0 0.0
    %707 = vmatprep.subr.mxu0 0.0
    %708 = vmatpush1.msra.mxu0 0.0
    %709 = vmatprep.subr.mxu0 0.0
    %710 = vmatpush1.msra.mxu0 0.0
    %711 = vmatprep.subr.mxu0 0.0
    %712 = vmatpush1.msra.mxu0 0.0
    %713 = vmatprep.subr.mxu0 0.0
    %714 = vmatpush1.msra.mxu0 0.0
    %715 = vmatprep.subr.mxu0 0.0
    %716 = vmatpush1.msra.mxu0 0.0
    %717 = vmatprep.subr.mxu0 0.0
    %718 = vmatpush1.msra.mxu0 0.0
    %719 = vmatprep.subr.mxu0 0.0
    %720 = vmatpush1.msra.mxu0 0.0
    %721 = vmatprep.subr.mxu0 0.0
    %722 = vmatpush1.msra.mxu0 0.0
    %723 = vmatprep.subr.mxu0 0.0
    %724 = vmatpush1.msra.mxu0 0.0
    %725 = vmatprep.subr.mxu0 0.0
    %726 = vmatpush1.msra.mxu0 0.0
    %727 = vmatprep.subr.mxu0 0.0
    %728 = vmatpush1.msra.mxu0 0.0
    %729 = vmatprep.subr.mxu0 0.0
    %730 = vmatpush1.msra.mxu0 0.0
    %731 = vmatprep.subr.mxu0 0.0
    %732 = vmatpush1.msra.mxu0 0.0
    %733 = vmatprep.subr.mxu0 0.0
    %734 = vmatpush1.msra.mxu0 0.0
    %735 = vmatprep.subr.mxu0 0.0
    %736 = vmatpush1.msra.mxu0 0.0
    %737 = vmatprep.subr.mxu0 0.0
    %738 = vmatpush1.msra.mxu0 0.0
    %739 = vmatprep.mubr.f32.mxu0 0.0
    %740 = vmatmul.mubr.f32.gmra.mrb[0].mxu0 %v673
    %v741 = vpop.f32.mrb[0].mxu0
    %v742 = vadd.f32 %v190, %v741
    %v743 = vpop.f32.mrb[0].mxu0
    %744 = vdwg.mxu0
    %v745 = vtanh.pop %v742
    %747 = vrot.lane.b32.xlu0 %v745, 96
    %v748 = vpop.permute.xlu0 %747
    %750 = vst.msk [vmem:[#allocation2 + $0x5] sm:$0x2] %vm281, %v748
    %v751 = vsel %vm202, %v745, 0
    %753 = vmatprep.subr.mxu0 0.0
    %754 = vmatpush1.msra.mxu0 %v192
    %755 = vmatprep.subr.mxu0 0.0
    %756 = vmatpush1.msra.mxu0 %v193
    %757 = vmatprep.subr.mxu0 0.0
    %758 = vmatpush1.msra.mxu0 %v194
    %759 = vmatprep.subr.mxu0 0.0
    %760 = vmatpush1.msra.mxu0 %v195
    %761 = vmatprep.subr.mxu0 0.0
    %762 = vmatpush1.msra.mxu0 %v196
    %763 = vmatprep.subr.mxu0 0.0
    %764 = vmatpush1.msra.mxu0 %v197
    %765 = vmatprep.subr.mxu0 0.0
    %766 = vmatpush1.msra.mxu0 %v198
    %767 = vmatprep.subr.mxu0 0.0
    %768 = vmatpush1.msra.mxu0 %v199
    %769 = vmatprep.subr.mxu0 0.0
    %770 = vmatpush1.msra.mxu0 0.0
    %771 = vmatprep.subr.mxu0 0.0
    %772 = vmatpush1.msra.mxu0 0.0
    %773 = vmatprep.subr.mxu0 0.0
    %774 = vmatpush1.msra.mxu0 0.0
    %775 = vmatprep.subr.mxu0 0.0
    %776 = vmatpush1.msra.mxu0 0.0
    %777 = vmatprep.subr.mxu0 0.0
    %778 = vmatpush1.msra.mxu0 0.0
    %779 = vmatprep.subr.mxu0 0.0
    %780 = vmatpush1.msra.mxu0 0.0
    %781 = vmatprep.subr.mxu0 0.0
    %782 = vmatpush1.msra.mxu0 0.0
    %783 = vmatprep.subr.mxu0 0.0
    %784 = vmatpush1.msra.mxu0 0.0
    %785 = vmatprep.subr.mxu0 0.0
    %786 = vmatpush1.msra.mxu0 0.0
    %787 = vmatprep.subr.mxu0 0.0
    %788 = vmatpush1.msra.mxu0 0.0
    %789 = vmatprep.subr.mxu0 0.0
    %790 = vmatpush1.msra.mxu0 0.0
    %791 = vmatprep.subr.mxu0 0.0
    %792 = vmatpush1.msra.mxu0 0.0
    %793 = vmatprep.subr.mxu0 0.0
    %794 = vmatpush1.msra.mxu0 0.0
    %795 = vmatprep.subr.mxu0 0.0
    %796 = vmatpush1.msra.mxu0 0.0
    %797 = vmatprep.subr.mxu0 0.0
    %798 = vmatpush1.msra.mxu0 0.0
    %799 = vmatprep.subr.mxu0 0.0
    %800 = vmatpush1.msra.mxu0 0.0
    %801 = vmatprep.subr.mxu0 0.0
    %802 = vmatpush1.msra.mxu0 0.0
    %803 = vmatprep.subr.mxu0 0.0
    %804 = vmatpush1.msra.mxu0 0.0
    %805 = vmatprep.subr.mxu0 0.0
    %806 = vmatpush1.msra.mxu0 0.0
    %807 = vmatprep.subr.mxu0 0.0
    %808 = vmatpush1.msra.mxu0 0.0
    %809 = vmatprep.subr.mxu0 0.0
    %810 = vmatpush1.msra.mxu0 0.0
    %811 = vmatprep.subr.mxu0 0.0
    %812 = vmatpush1.msra.mxu0 0.0
    %813 = vmatprep.subr.mxu0 0.0
    %814 = vmatpush1.msra.mxu0 0.0
    %815 = vmatprep.subr.mxu0 0.0
    %816 = vmatpush1.msra.mxu0 0.0
    %817 = vmatprep.mubr.f32.mxu0 0.0
    %818 = vmatmul.mubr.f32.gmra.mrb[0].mxu0 %v751
    %v819 = vpop.f32.mrb[0].mxu0
    %v820 = vadd.f32 %v191, %v819
    %v821 = vpop.f32.mrb[0].mxu0
    %822 = vdwg.mxu0
    %v823 = vtanh.pop %v820
    %825 = vrot.lane.b32.xlu0 %v823, 96
    %v826 = vpop.permute.xlu0 %825
    %828 = vst.msk [vmem:[#allocation2 + $0x6] sm:$0x2] %vm281, %v826
    %v829 = vld [vmem:[#allocation2] sm:$0xff]
    %v830 = vld [vmem:[%s5] sm:$0xff]
    %v831 = vld [vmem:[%s5 + $0x8] sm:$0xff]
    %v832 = vld [vmem:[%s5 + $0x10] sm:$0xff]
    %v833 = vld [vmem:[%s5 + $0x18] sm:$0xff]
    %v834 = vld [vmem:[%s6] sm:$0x1]
    %v836 = vlaneseq
    %v837 = vshrl.u32 %v836, 7
    %v838 = vsub.s32 0, %v837
    %v839 = vrot.slane %v834, %v838
    %v842 = vsel %vm183, %v829, 0
    %844 = vmatprep.subr.mxu0 0.0
    %845 = vmatpush1.msra.mxu0 %v830
    %846 = vmatprep.subr.mxu0 0.0
    %847 = vmatpush1.msra.mxu0 %v831
    %848 = vmatprep.subr.mxu0 0.0
    %849 = vmatpush1.msra.mxu0 %v832
    %850 = vmatprep.subr.mxu0 0.0
    %851 = vmatpush1.msra.mxu0 %v833
    %852 = vmatprep.subr.mxu0 0.0
    %853 = vmatpush1.msra.mxu0 0.0
    %854 = vmatprep.subr.mxu0 0.0
    %855 = vmatpush1.msra.mxu0 0.0
    %856 = vmatprep.subr.mxu0 0.0
    %857 = vmatpush1.msra.mxu0 0.0
    %858 = vmatprep.subr.mxu0 0.0
    %859 = vmatpush1.msra.mxu0 0.0
    %860 = vmatprep.subr.mxu0 0.0
    %861 = vmatpush1.msra.mxu0 0.0
    %862 = vmatprep.subr.mxu0 0.0
    %863 = vmatpush1.msra.mxu0 0.0
    %864 = vmatprep.subr.mxu0 0.0
    %865 = vmatpush1.msra.mxu0 0.0
    %866 = vmatprep.subr.mxu0 0.0
    %867 = vmatpush1.msra.mxu0 0.0
    %868 = vmatprep.subr.mxu0 0.0
    %869 = vmatpush1.msra.mxu0 0.0
    %870 = vmatprep.subr.mxu0 0.0
    %871 = vmatpush1.msra.mxu0 0.0
    %872 = vmatprep.subr.mxu0 0.0
    %873 = vmatpush1.msra.mxu0 0.0
    %874 = vmatprep.subr.mxu0 0.0
    %875 = vmatpush1.msra.mxu0 0.0
    %876 = vmatprep.subr.mxu0 0.0
    %877 = vmatpush1.msra.mxu0 0.0
    %878 = vmatprep.subr.mxu0 0.0
    %879 = vmatpush1.msra.mxu0 0.0
    %880 = vmatprep.subr.mxu0 0.0
    %881 = vmatpush1.msra.mxu0 0.0
    %882 = vmatprep.subr.mxu0 0.0
    %883 = vmatpush1.msra.mxu0 0.0
    %884 = vmatprep.subr.mxu0 0.0
    %885 = vmatpush1.msra.mxu0 0.0
    %886 = vmatprep.subr.mxu0 0.0
    %887 = vmatpush1.msra.mxu0 0.0
    %888 = vmatprep.subr.mxu0 0.0
    %889 = vmatpush1.msra.mxu0 0.0
    %890 = vmatprep.subr.mxu0 0.0
    %891 = vmatpush1.msra.mxu0 0.0
    %892 = vmatprep.subr.mxu0 0.0
    %893 = vmatpush1.msra.mxu0 0.0
    %894 = vmatprep.subr.mxu0 0.0
    %895 = vmatpush1.msra.mxu0 0.0
    %896 = vmatprep.subr.mxu0 0.0
    %897 = vmatpush1.msra.mxu0 0.0
    %898 = vmatprep.subr.mxu0 0.0
    %899 = vmatpush1.msra.mxu0 0.0
    %900 = vmatprep.subr.mxu0 0.0
    %901 = vmatpush1.msra.mxu0 0.0
    %902 = vmatprep.subr.mxu0 0.0
    %903 = vmatpush1.msra.mxu0 0.0
    %904 = vmatprep.subr.mxu0 0.0
    %905 = vmatpush1.msra.mxu0 0.0
    %906 = vmatprep.subr.mxu0 0.0
    %907 = vmatpush1.msra.mxu0 0.0
    %908 = vmatprep.mubr.f32.mxu0 0.0
    %909 = vmatmul.mubr.f32.gmra.mrb[0].mxu0 %v842
    %v910 = vpop.f32.mrb[0].mxu0
    %v911 = vadd.f32 %v839, %v910
    %v912 = vpop.f32.mrb[0].mxu0
    %913 = vdwg.mxu0
    %vm914 = vcmask 64512
    %915 = vst.msk [vmem:[#allocation3] sm:$0xff] %vm914, %v911
    // Predicated region
    $region30: #{tpu_custom_call.1} parent=1 // pred_check
      _
    $region31: #{tpu_custom_call.1} parent=1 // pred_check_branch
      %917 = sbr.rel (0) target = $region33
    $region32: #{tpu_custom_call.1} parent=1 // pred_region
      %s919 = ssub.s32 128, 128
      %920 = vsyncadd [#allocation4], %s919
      %s922 = sshll.u32 [#allocation3], 4
      %s923 = int_to_ptr.vmem [resolvable:$true] %s922
      %925 = dma.vmem_to_hbm [thread:$0]  %s923, 128, %s7, [#allocation4]
    $region33: #{tpu_custom_call.1} parent=1 // pred_fallthru
      _
    // Predicated region
    $region34: #{tpu_custom_call.1} parent=1 // pred_check
      _
    $region35: #{tpu_custom_call.1} parent=1 // pred_check_branch
      %927 = sbr.rel (0) target = $region37
    $region36: #{tpu_custom_call.1} parent=1 // pred_region
      %928 = dma.done [#allocation4], 128
    $region37: #{tpu_custom_call.1} parent=1 // pred_fallthru
      _
    %929 = vsyncpa [#allocation4], 1

</llo_original>
